<compile_context>
chip_gen: v7x
topology: tpu7x:2x2x1
jax: 0.10.0
libtpu: 0.0.40
codegen_flags: <defaults>
</compile_context>

<pallas_src>
import functools
import math

import jax
import jax.numpy as jnp
from jax.experimental import pallas as pl
from jax.experimental.pallas import tpu as pltpu


def _round_up(n, m):
    return ((n + m - 1) // m) * m


def _gelu(x, approximate):
    if approximate:
        # tanh approximation -> EUP slot (only matters when VALU binds; deviates
        # slightly from PyTorch's exact nn.GELU(), hence gated behind a flag).
        c = math.sqrt(2.0 / math.pi)
        return 0.5 * x * (1.0 + jnp.tanh(c * (x + 0.044715 * x * x * x)))
    # PyTorch nn.GELU() default: exact erf-based GELU (f32 math on the accumulator).
    return 0.5 * x * (1.0 + jax.lax.erf(x * (1.0 / math.sqrt(2.0))))


def u_mlp_kernel(x_ref, w1_ref, b1_ref, w2_ref, b2_ref, o_ref, acc_ref, *,
                 approximate_gelu):
    """Grid = (token tiles i, D tiles j, experts e); e is the reduction axis.

      x_ref : (tm, sub_dim)         expert-e feature slice of token tile i
      w1_ref: (sub_dim, sub_hidden) expert-e linear1 weight
      b1_ref: (1, sub_hidden)       expert-e linear1 bias
      w2_ref: (sub_hidden, tn)      expert-e rows of W2, D-tile j
      b2_ref: (1, tn)               linear2 bias, D-tile j (added once)
      o_ref : (tm, tn)              output tile (written on last expert)
      acc_ref: (tm, tn) f32         accumulator scratch
    """
    e = pl.program_id(2)

    # Native-dtype tiles straight into the MXU; accumulate in f32.
    h = jnp.dot(x_ref[...], w1_ref[...], preferred_element_type=jnp.float32)
    h = h + b1_ref[...].astype(jnp.float32)
    h = _gelu(h, approximate_gelu)                    # f32 activation math
    p = jnp.dot(h.astype(w2_ref.dtype), w2_ref[...],
                preferred_element_type=jnp.float32)

    # Initialize the accumulator from the first expert's product (saves a full
    # (tm, tn) zero store plus a read-modify-add on step 0).
    @pl.when(e == 0)
    def _init():
        acc_ref[...] = p

    @pl.when(e > 0)
    def _accum():
        acc_ref[...] += p

    @pl.when(e == pl.num_programs(2) - 1)
    def _finalize():
        o_ref[...] = (acc_ref[...] + b2_ref[...].astype(jnp.float32)).astype(o_ref.dtype)


@functools.partial(jax.jit, static_argnames=("tm", "tn", "approximate_gelu"))
def u_mlp_forward(x, w1_bank, b1_bank, w2, b2, *, tm=512, tn=None,
                  approximate_gelu=False):
    """x: (B, S, D); w1_bank: (E, sub_dim, sub_hidden); b1_bank: (E, 1, sub_hidden);
    w2: (H, D); b2: (1, D).  Returns (B, S, D)."""
    B, S, D = x.shape
    E, sub_dim, sub_hidden = w1_bank.shape
    H = E * sub_hidden
    assert w2.shape == (H, D), "W2 must be (hidden_dim, dim)"
    N = B * S

    act_item = jnp.dtype(x.dtype).itemsize
    w_item = jnp.dtype(w2.dtype).itemsize

    # ---- Tile selection -----------------------------------------------------
    # Token tile: large MXU-aligned tile (multiple of 16 keeps both f32 (8) and
    # bf16 (16) sublane packing happy), clamped for tiny demo problems.
    tm_eff = min(tm, _round_up(N, 16))
    # Keep >= 2 token tiles when there is enough work so the "parallel" axis
    # feeds both v7x TensorCores.
    if N >= 256 and pl.cdiv(N, tm_eff) == 1:
        tm_eff = _round_up(pl.cdiv(N, 2), 16)

    # Output (D) tile: full D unless the double-buffered block footprint would
    # blow the VMEM budget (v7x: 64 MiB/TC).  Shrink tn first (re-doing the small
    # first matmul per D-tile costs only ~1/E of the FLOPs), then tm.
    try:
        vmem_cap = pltpu.get_tpu_info().vmem_capacity_bytes
    except Exception:  # conservative fallback if the query is unavailable
        vmem_cap = 64 * 1024 * 1024
    budget = int(vmem_cap * 0.78)  # ~100 MiB on 128 MiB parts, ~50 MiB on v7x

    def footprint(tm_b, tn_b):
        b = 2 * tm_b * sub_dim * act_item           # x block (double-buffered)
        b += 2 * sub_dim * sub_hidden * w_item      # W1_e
        b += 2 * sub_hidden * w_item                # b1_e
        b += 2 * sub_hidden * tn_b * w_item         # W2 rows of expert e, D-tile
        b += 2 * tn_b * w_item                      # b2 tile
        b += 2 * tm_b * tn_b * act_item             # output tile
        b += tm_b * tn_b * 4                        # f32 accumulator scratch
        return b

    tn_eff = D if tn is None else min(D, _round_up(tn, 128))
    while footprint(tm_eff, tn_eff) > budget and tn_eff > 128:
        tn_eff = max(128, _round_up(tn_eff // 2, 128))
    while footprint(tm_eff, tn_eff) > budget and tm_eff > 16:
        tm_eff = max(16, _round_up(tm_eff // 2, 16))

    vmem_limit = int(min(vmem_cap * 0.9,
                         max(footprint(tm_eff, tn_eff) + (2 << 20), 32 << 20)))

    grid = (pl.cdiv(N, tm_eff), pl.cdiv(D, tn_eff), E)

    # ---- Layout plumbing (no activation copy on the fast path) --------------
    x2d = x.reshape(N, D)
    if sub_dim % 128 == 0 or E == 1:
        # Fast path: index expert-e's sub_dim-wide column block of x directly.
        x_in = x2d
        x_spec = pl.BlockSpec((tm_eff, sub_dim), lambda i, j, e: (i, e))
    else:
        # Fallback for lane-unaligned sub_dim (last-dim blocks must be a
        # multiple of 128 or the full dim): expert-major copy so sub_dim is the
        # full last axis.  Costs one extra HBM round trip of the activations —
        # only hit by tiny demo configs.
        x_in = x2d.reshape(N, E, sub_dim).swapaxes(0, 1)      # (E, N, sub_dim)
        x_spec = pl.BlockSpec((pl.Squeezed(), tm_eff, sub_dim),
                              lambda i, j, e: (e, i, 0))

    w2_bank = w2.reshape(E, sub_hidden, D)   # rows of W2 grouped by owning expert
    b2_r = b2.reshape(1, D)

    kernel = functools.partial(u_mlp_kernel, approximate_gelu=approximate_gelu)

    # NOTE: a ragged trailing token tile computes GELU on padded/garbage rows;
    # that is harmless (erf is bounded and nothing reduces across rows) and the
    # out-of-range output rows are masked on store.
    out2d = pl.pallas_call(
        kernel,
        out_shape=jax.ShapeDtypeStruct((N, D), x.dtype),
        grid_spec=pltpu.PrefetchScalarGridSpec(
            num_scalar_prefetch=0,
            grid=grid,
            in_specs=[
                x_spec,                                                     # x slice
                pl.BlockSpec((pl.Squeezed(), sub_dim, sub_hidden),
                             lambda i, j, e: (e, 0, 0)),                    # W1_e
                pl.BlockSpec((pl.Squeezed(), 1, sub_hidden),
                             lambda i, j, e: (e, 0, 0)),                    # b1_e
                pl.BlockSpec((pl.Squeezed(), sub_hidden, tn_eff),
                             lambda i, j, e: (e, 0, j)),                    # W2 rows e
                pl.BlockSpec((1, tn_eff), lambda i, j, e: (0, j)),          # b2 tile
            ],
            out_specs=pl.BlockSpec((tm_eff, tn_eff), lambda i, j, e: (i, j)),
            scratch_shapes=[pltpu.VMEM((tm_eff, tn_eff), jnp.float32)],
        ),
        compiler_params=pltpu.CompilerParams(
            dimension_semantics=("parallel", "parallel", "arbitrary"),
            vmem_limit_bytes=vmem_limit),
    )(x_in, w1_bank, b1_bank, w2_bank, b2_r)
    return out2d.reshape(B, S, D)


def init_params(key, d_model, d_inner, n_experts, dtype=jnp.float32):
    """Deterministic init mimicking nn.Linear's uniform(-1/sqrt(fan_in), ...)."""
    sub_dim = d_model // n_experts
    sub_hidden = d_inner // n_experts
    k1, k2, k3, k4 = jax.random.split(key, 4)

    bound1 = 1.0 / math.sqrt(sub_dim)
    w1_bank = jax.random.uniform(k1, (n_experts, sub_dim, sub_hidden), dtype,
                                 -bound1, bound1)
    b1_bank = jax.random.uniform(k2, (n_experts, 1, sub_hidden), dtype,
                                 -bound1, bound1)

    bound2 = 1.0 / math.sqrt(d_inner)
    w2 = jax.random.uniform(k3, (d_inner, d_model), dtype, -bound2, bound2)
    b2 = jax.random.uniform(k4, (1, d_model), dtype, -bound2, bound2)
    return w1_bank, b1_bank, w2, b2


def reference_forward(x, w1_bank, b1_bank, w2, b2):
    """Pure-JAX f32 reference: gelu(x @ blockdiag(W1) + b1) @ W2 + b2."""
    B, S, D = x.shape
    E, sd, sh = w1_bank.shape
    xf = x.astype(jnp.float32)
    h = jnp.einsum("bsed,edh->bseh", xf.reshape(B, S, E, sd),
                   w1_bank.astype(jnp.float32))
    h = h + b1_bank.astype(jnp.float32).reshape(E, sh)
    h = jax.nn.gelu(h, approximate=False)
    out = h.reshape(B, S, E * sh) @ w2.astype(jnp.float32) + b2.astype(jnp.float32)
    return out


if __name__ == "__main__":
    key = jax.random.PRNGKey(0)

    # Config A: lane-aligned experts (sub_dim = 128) -> direct-x fast path.
    B, S, D, H, E = 2, 8, 256, 512, 2
    k_x, k_p, key = jax.random.split(key, 3)
    x = jax.random.normal(k_x, (B, S, D), jnp.float32)
    params = init_params(k_p, D, H, E, jnp.float32)

    out = jax.block_until_ready(u_mlp_forward(x, *params))
    ref = reference_forward(x, *params)
    assert out.shape == (B, S, D)
    # Tolerances account for the MXU's default (bf16-pass) matmul precision on
    # f32 inputs; typical error is far below these bounds.
    err = float(jnp.max(jnp.abs(out - ref)))
    assert err < 5e-2, f"f32 mismatch vs JAX reference (max abs err {err})"

    # bf16 fast path (native MXU dtype, f32 accumulation) — looser tolerance.
    xb = x.astype(jnp.bfloat16)
    pb = [p.astype(jnp.bfloat16) for p in params]
    out_bf16 = jax.block_until_ready(u_mlp_forward(xb, *pb))
    err_bf = float(jnp.max(jnp.abs(out_bf16.astype(jnp.float32) - ref)))
    assert err_bf < 1e-1, f"bf16 mismatch vs JAX reference (max abs err {err_bf})"

    # Config B: tiny sub_dim (not a multiple of 128) exercises the transposed
    # fallback activation layout.
    B2, S2, D2, H2, E2 = 2, 8, 32, 64, 4
    k_x2, k_p2 = jax.random.split(key)
    x2 = jax.random.normal(k_x2, (B2, S2, D2), jnp.float32)
    params2 = init_params(k_p2, D2, H2, E2, jnp.float32)
    out2 = jax.block_until_ready(u_mlp_forward(x2, *params2))
    ref2 = reference_forward(x2, *params2)
    err2 = float(jnp.max(jnp.abs(out2 - ref2)))
    assert err2 < 5e-2, f"f32 fallback-path mismatch vs JAX reference (max abs err {err2})"

    print("KERNEL_OK")
</pallas_src>

<mosaic_0001>
module attributes {stable_mosaic.version = 11 : i64} {
  func.func @u_mlp_kernel(%arg0: i32, %arg1: i32, %arg2: i32, %arg3: memref<16x128xf32, #tpu.memory_space<vmem>>, %arg4: memref<1x128x256xf32, #tpu.memory_space<vmem>>, %arg5: memref<1x1x256xf32, #tpu.memory_space<vmem>>, %arg6: memref<1x256x256xf32, #tpu.memory_space<vmem>>, %arg7: memref<1x256xf32, #tpu.memory_space<vmem>>, %arg8: memref<16x256xf32, #tpu.memory_space<vmem>>, %arg9: memref<16x256xf32, #tpu.memory_space<vmem>>) attributes {dimension_semantics = [#tpu.dimension_semantics<parallel>, #tpu.dimension_semantics<parallel>, #tpu.dimension_semantics<arbitrary>], iteration_bounds = array<i64: 1, 1, 2>, scalar_prefetch = 0 : i64, scratch_operands = 1 : i64, tpu.core_type = #tpu.core_type<tc>, window_params = [{transform_indices = @transform_0, window_bounds = array<i64: 16, 128>}, {transform_indices = @transform_1, window_bounds = array<i64: 1, 128, 256>}, {transform_indices = @transform_2, window_bounds = array<i64: 1, 1, 256>}, {transform_indices = @transform_3, window_bounds = array<i64: 1, 256, 256>}, {transform_indices = @transform_4, window_bounds = array<i64: 1, 256>}, {transform_indices = @transform_5, window_bounds = array<i64: 16, 256>}]} {
    %c0 = arith.constant 0 : index
    %c0_0 = arith.constant 0 : index
    %0 = vector.load %arg3[%c0, %c0_0] : memref<16x128xf32, #tpu.memory_space<vmem>>, vector<16x128xf32>
    %c0_1 = arith.constant 0 : index
    %c0_2 = arith.constant 0 : index
    %c0_3 = arith.constant 0 : index
    %1 = vector.load %arg4[%c0_1, %c0_2, %c0_3] : memref<1x128x256xf32, #tpu.memory_space<vmem>>, vector<1x128x256xf32>
    %2 = vector.shape_cast %1 : vector<1x128x256xf32> to vector<128x256xf32>
    %cst = arith.constant dense<0.000000e+00> : vector<16x256xf32>
    %3 = tpu.matmul %0, %2, %cst {dimension_numbers = #tpu.dot_dimension_numbers<[1], [0], [0], [1], [0, 0, 1, 1], [], []>} : vector<16x128xf32>, vector<128x256xf32>, vector<16x256xf32> -> vector<16x256xf32>
    %c0_4 = arith.constant 0 : index
    %c0_5 = arith.constant 0 : index
    %c0_6 = arith.constant 0 : index
    %4 = vector.load %arg5[%c0_4, %c0_5, %c0_6] : memref<1x1x256xf32, #tpu.memory_space<vmem>>, vector<1x1x256xf32>
    %5 = vector.shape_cast %4 : vector<1x1x256xf32> to vector<1x256xf32>
    %6 = vector.broadcast %5 : vector<1x256xf32> to vector<16x256xf32>
    %7 = arith.addf %3, %6 : vector<16x256xf32>
    %cst_7 = arith.constant 5.000000e-01 : f32
    %8 = vector.broadcast %cst_7 : f32 to vector<16x256xf32>
    %9 = arith.mulf %8, %7 : vector<16x256xf32>
    %cst_8 = arith.constant 0.707106769 : f32
    %10 = vector.broadcast %cst_8 : f32 to vector<16x256xf32>
    %11 = arith.mulf %7, %10 : vector<16x256xf32>
    %12 = math.erf %11 : vector<16x256xf32>
    %cst_9 = arith.constant 1.000000e+00 : f32
    %13 = vector.broadcast %cst_9 : f32 to vector<16x256xf32>
    %14 = arith.addf %13, %12 : vector<16x256xf32>
    %15 = arith.mulf %9, %14 : vector<16x256xf32>
    %c0_10 = arith.constant 0 : index
    %c0_11 = arith.constant 0 : index
    %c0_12 = arith.constant 0 : index
    %16 = vector.load %arg6[%c0_10, %c0_11, %c0_12] : memref<1x256x256xf32, #tpu.memory_space<vmem>>, vector<1x256x256xf32>
    %17 = vector.shape_cast %16 : vector<1x256x256xf32> to vector<256x256xf32>
    %cst_13 = arith.constant dense<0.000000e+00> : vector<16x256xf32>
    %18 = tpu.matmul %15, %17, %cst_13 {dimension_numbers = #tpu.dot_dimension_numbers<[1], [0], [0], [1], [0, 0, 1, 1], [], []>} : vector<16x256xf32>, vector<256x256xf32>, vector<16x256xf32> -> vector<16x256xf32>
    %c0_i32 = arith.constant 0 : i32
    %19 = arith.cmpi eq, %arg2, %c0_i32 : i32
    %20 = arith.extui %19 : i1 to i32
    %c0_i32_14 = arith.constant 0 : i32
    %21 = arith.cmpi ne, %20, %c0_i32_14 : i32
    scf.if %21 {
      %c0_18 = arith.constant 0 : index
      %c0_19 = arith.constant 0 : index
      %28 = vector.load %arg9[%c0_18, %c0_19] : memref<16x256xf32, #tpu.memory_space<vmem>>, vector<16x256xf32>
      tpu.vector_store %arg9[%c0_18, %c0_19], %18 {strides = array<i32>} : memref<16x256xf32, #tpu.memory_space<vmem>>, vector<16x256xf32>,
    } else {
    }
    %c0_i32_15 = arith.constant 0 : i32
    %22 = arith.cmpi sgt, %arg2, %c0_i32_15 : i32
    %23 = arith.extui %22 : i1 to i32
    %c0_i32_16 = arith.constant 0 : i32
    %24 = arith.cmpi ne, %23, %c0_i32_16 : i32
    scf.if %24 {
      %c0_18 = arith.constant 0 : index
      %c0_19 = arith.constant 0 : index
      %28 = vector.load %arg9[%c0_18, %c0_19] : memref<16x256xf32, #tpu.memory_space<vmem>>, vector<16x256xf32>
      %29 = arith.addf %28, %18 : vector<16x256xf32>
      %c0_20 = arith.constant 0 : index
      %c0_21 = arith.constant 0 : index
      %30 = vector.load %arg9[%c0_20, %c0_21] : memref<16x256xf32, #tpu.memory_space<vmem>>, vector<16x256xf32>
      tpu.vector_store %arg9[%c0_20, %c0_21], %29 {strides = array<i32>} : memref<16x256xf32, #tpu.memory_space<vmem>>, vector<16x256xf32>,
    } else {
    }
    %c1_i32 = arith.constant 1 : i32
    %25 = arith.cmpi eq, %arg2, %c1_i32 : i32
    %26 = arith.extui %25 : i1 to i32
    %c0_i32_17 = arith.constant 0 : i32
    %27 = arith.cmpi ne, %26, %c0_i32_17 : i32
    scf.if %27 {
      %c0_18 = arith.constant 0 : index
      %c0_19 = arith.constant 0 : index
      %28 = vector.load %arg9[%c0_18, %c0_19] : memref<16x256xf32, #tpu.memory_space<vmem>>, vector<16x256xf32>
      %c0_20 = arith.constant 0 : index
      %c0_21 = arith.constant 0 : index
      %29 = vector.load %arg7[%c0_20, %c0_21] : memref<1x256xf32, #tpu.memory_space<vmem>>, vector<1x256xf32>
      %30 = vector.broadcast %29 : vector<1x256xf32> to vector<16x256xf32>
      %31 = arith.addf %28, %30 : vector<16x256xf32>
      %c0_22 = arith.constant 0 : index
      %c0_23 = arith.constant 0 : index
      %32 = vector.load %arg8[%c0_22, %c0_23] : memref<16x256xf32, #tpu.memory_space<vmem>>, vector<16x256xf32>
      tpu.vector_store %arg8[%c0_22, %c0_23], %31 {strides = array<i32>} : memref<16x256xf32, #tpu.memory_space<vmem>>, vector<16x256xf32>,
    } else {
    }
    return
  }
  func.func @transform_0(%arg0: i32, %arg1: i32, %arg2: i32) -> (i32, i32) {
    %c0_i32 = arith.constant 0 : i32
    return %arg0, %arg2 : i32, i32
  }
  func.func @transform_1(%arg0: i32, %arg1: i32, %arg2: i32) -> (i32, i32, i32) {
    %c0_i32 = arith.constant 0 : i32
    %c0_i32_0 = arith.constant 0 : i32
    %c0_i32_1 = arith.constant 0 : i32
    return %arg2, %c0_i32, %c0_i32_0 : i32, i32, i32
  }
  func.func @transform_2(%arg0: i32, %arg1: i32, %arg2: i32) -> (i32, i32, i32) {
    %c0_i32 = arith.constant 0 : i32
    %c0_i32_0 = arith.constant 0 : i32
    %c0_i32_1 = arith.constant 0 : i32
    return %arg2, %c0_i32, %c0_i32_0 : i32, i32, i32
  }
  func.func @transform_3(%arg0: i32, %arg1: i32, %arg2: i32) -> (i32, i32, i32) {
    %c0_i32 = arith.constant 0 : i32
    %c0_i32_0 = arith.constant 0 : i32
    return %arg2, %c0_i32, %arg1 : i32, i32, i32
  }
  func.func @transform_4(%arg0: i32, %arg1: i32, %arg2: i32) -> (i32, i32) {
    %c0_i32 = arith.constant 0 : i32
    %c0_i32_0 = arith.constant 0 : i32
    return %c0_i32, %arg1 : i32, i32
  }
  func.func @transform_5(%arg0: i32, %arg1: i32, %arg2: i32) -> (i32, i32) {
    %c0_i32 = arith.constant 0 : i32
    return %arg0, %arg1 : i32, i32
  }
}

</mosaic_0001>

<llo_original>
// kernel: u_mlp_forward.1
$region0: #{u_mlp_forward.1}
  #allocation0 [shape = 'u32[]', space=smem, size = 0x4, offset = 0x4, fixed_abs, tag = 'smem constant byte address 0x4 - core index']
  #allocation1 [shape = 'u32[144,128]{1,0:T(1,128)}', space=vmem, size = 0x12000, scoped, tag = 'internal scratch']
  #allocation2 [shape = 'f32[16,256]{1,0:T(8,128)}', space=vmem, size = 0x4000, scoped, tag = 'scratch operand']
  %s0 = inlined_call_operand.hbm [shape: f32[16,256], index: 0, kind: input, shape index: {}]
  %s1 = inlined_call_operand.hbm [shape: f32[2,128,256], index: 1, kind: input, shape index: {}]
  %s2 = inlined_call_operand.vmem [shape: f32[2,1,256], index: 2, kind: input, shape index: {}]
  %s3 = inlined_call_operand.hbm [shape: f32[2,256,256], index: 3, kind: input, shape index: {}]
  %s4 = inlined_call_operand.vmem [shape: f32[1,256], index: 4, kind: input, shape index: {}]
  %s5 = inlined_call_operand.hbm [shape: f32[16,256], index: 5, kind: output, shape index: {}]
  %s6 = sld [smem:[#allocation0]]
  $region77: #{u_mlp_forward.1} parent=0
    _
  %s8 = ssub.s32 1, %s6
  %s9 = scalar_select 0, %s8, %s6
  $region1: #{u_mlp_forward.1} parent=0
    #allocation3 [shape = 'u8[16384]{0}', space=vmem, size = 0x4000, scoped, tag = 'input window, operand 0']
    #allocation4 [shape = 's32[2]{0}', space=sflag, size = 0x8, scoped, tag = 'scoped memory for u_mlp_forward.1']
    #allocation5 [shape = 's32[2]{0}', space=sflag, size = 0x8, scoped, tag = 'scoped memory for u_mlp_forward.1']
    #allocation6 [shape = 'u8[262144]{0}', space=vmem, size = 0x40000, scoped, tag = 'input window, operand 1']
    #allocation7 [shape = 's32[2]{0}', space=sflag, size = 0x8, scoped, tag = 'scoped memory for u_mlp_forward.1']
    #allocation8 [shape = 'u8[524288]{0}', space=vmem, size = 0x80000, scoped, tag = 'input window, operand 3']
    #allocation9 [shape = 'u8[16384]{0}', space=vmem, size = 0x4000, scoped, tag = 'output window, operand 0, single buffered']
    %10 = vsyncpa [#allocation4], 0
    %s11 = scalar_lea.sflag [#allocation4], 1
    %12 = vsyncpa %s11, 0
    %13 = vsyncpa [#allocation7], 0
    %s14 = scalar_lea.sflag [#allocation7], 1
    %15 = vsyncpa %s14, 0
    %16 = vsyncpa [#allocation5], 0
    loop: start=0, step=1, limit=4
    $region2: #{u_mlp_forward.1} parent=1 // loop_pre_header
      _
    $region3: #{u_mlp_forward.1} parent=1 // loop_header
      %s18 = sphi 0, %s22
      %p19 = scmp.ge.s32.totalorder %s18, 4
      %s25 = sphi 0, %s44
      %s26 = sphi 0, %s40
      %s27 = sphi 0, %s36
      %s28 = sphi 0, %s25
      %s29 = sphi 0, %s26
      %s30 = sphi 0, %s27
      %s31 = sphi 0, %s28
      %s32 = sphi 0, %s29
      %s33 = sphi 0, %s30
      %s49 = sphi 0, %s51
      %s52 = sphi 0, %s49
      %s53 = sphi 0, %s52
      %s69 = sphi 0, %s53
      %s75 = sphi 0, %s77
      %s78 = sphi 0, %s75
      %s79 = sphi 0, %s78
      %s95 = sphi 0, %s79
      %s101 = sphi 0, %s103
      %s104 = sphi 0, %s101
      %s105 = sphi 0, %s104
      %s121 = sphi 0, %s105
      %s129 = sphi 0, %s131
      %s132 = sphi 0, %s129
      %s133 = sphi 0, %s132
      %s149 = sphi 0, %s133
      %s155 = sphi 0, %s157
      %s158 = sphi 0, %s155
      %s159 = sphi 0, %s158
      %s175 = sphi 0, %s159
      %s183 = sphi 0, %s185
      %s186 = sphi 0, %s183
      %s187 = sphi 0, %s186
      %s203 = sphi 0, %s187
    $region4: #{u_mlp_forward.1} parent=1 // loop_header_branch
      %21 = sbr.rel (%p19) target = $region8
    $region5: #{u_mlp_forward.1} parent=1 // loop_body
      %s23 = ssub.s32 %s18, 1
      %s24 = ssub.s32 %s18, 2
      %s34 = sadd.s32 1, %s27
      %p35 = scmp.ge.s32.totalorder %s34, 2
      %s36 = scalar_select %p35, 0, %s34
      %s37 = sadd.s32 1, %s26
      %s38 = scalar_select %p35, %s37, %s26
      %p39 = scmp.ge.s32.totalorder %s38, 1
      %s40 = scalar_select %p39, 0, %s38
      %s41 = sadd.s32 1, %s25
      %s42 = scalar_select %p39, %s41, %s25
      %p43 = scmp.ge.s32.totalorder %s42, 1
      %s44 = scalar_select %p43, 0, %s42
      %s45 = ssub.s32 %s25, %s44
      %s46 = ssub.s32 %s27, %s36
      %s47 = sor.u32 %s45, %s46
      %p48 = scmp.eq.s32.totalorder %s47, 0
      %s50 = sadd.s32 %s49, 1
      %s51 = scalar_select %p48, %s49, %s50
      %p54 = pneg %p48
      %p55 = scmp.eq.s32.totalorder %s18, 1
      %p56 = por %p54, %p55
      %p57 = scmp.ne.s32.totalorder %s49, %s52
      %p58 = scmp.eq.s32.totalorder %s18, 0
      %p59 = por %p57, %p58
      %p60 = scmp.ne.s32.totalorder %s49, %s52
      %p61 = scmp.eq.s32.totalorder %s23, 1
      %p62 = por %p60, %p61
      %p63 = scmp.ne.s32.totalorder %s52, %s53
      %p64 = scmp.eq.s32.totalorder %s23, 0
      %p65 = por %p63, %p64
      %p66 = scmp.ne.s32.totalorder %s52, %s53
      %p67 = scmp.eq.s32.totalorder %s24, 1
      %p68 = por %p66, %p67
      %p70 = scmp.ne.s32.totalorder %s53, %s69
      %p71 = scmp.eq.s32.totalorder %s24, 0
      %p72 = por %p70, %p71
      %s73 = ssub.s32 %s27, %s36
      %p74 = scmp.eq.s32.totalorder %s73, 0
      %s76 = sadd.s32 %s75, 1
      %s77 = scalar_select %p74, %s75, %s76
      %p80 = pneg %p74
      %p81 = scmp.eq.s32.totalorder %s18, 1
      %p82 = por %p80, %p81
      %p83 = scmp.ne.s32.totalorder %s75, %s78
      %p84 = scmp.eq.s32.totalorder %s18, 0
      %p85 = por %p83, %p84
      %p86 = scmp.ne.s32.totalorder %s75, %s78
      %p87 = scmp.eq.s32.totalorder %s23, 1
      %p88 = por %p86, %p87
      %p89 = scmp.ne.s32.totalorder %s78, %s79
      %p90 = scmp.eq.s32.totalorder %s23, 0
      %p91 = por %p89, %p90
      %p92 = scmp.ne.s32.totalorder %s78, %s79
      %p93 = scmp.eq.s32.totalorder %s24, 1
      %p94 = por %p92, %p93
      %p96 = scmp.ne.s32.totalorder %s79, %s95
      %p97 = scmp.eq.s32.totalorder %s24, 0
      %p98 = por %p96, %p97
      %s99 = ssub.s32 %s27, %s36
      %p100 = scmp.eq.s32.totalorder %s99, 0
      %s102 = sadd.s32 %s101, 1
      %s103 = scalar_select %p100, %s101, %s102
      %p106 = pneg %p100
      %p107 = scmp.eq.s32.totalorder %s18, 1
      %p108 = por %p106, %p107
      %p109 = scmp.ne.s32.totalorder %s101, %s104
      %p110 = scmp.eq.s32.totalorder %s18, 0
      %p111 = por %p109, %p110
      %p112 = scmp.ne.s32.totalorder %s101, %s104
      %p113 = scmp.eq.s32.totalorder %s23, 1
      %p114 = por %p112, %p113
      %p115 = scmp.ne.s32.totalorder %s104, %s105
      %p116 = scmp.eq.s32.totalorder %s23, 0
      %p117 = por %p115, %p116
      %p118 = scmp.ne.s32.totalorder %s104, %s105
      %p119 = scmp.eq.s32.totalorder %s24, 1
      %p120 = por %p118, %p119
      %p122 = scmp.ne.s32.totalorder %s105, %s121
      %p123 = scmp.eq.s32.totalorder %s24, 0
      %p124 = por %p122, %p123
      %s125 = ssub.s32 %s27, %s36
      %s126 = ssub.s32 %s26, %s40
      %s127 = sor.u32 %s125, %s126
      %p128 = scmp.eq.s32.totalorder %s127, 0
      %s130 = sadd.s32 %s129, 1
      %s131 = scalar_select %p128, %s129, %s130
      %p134 = pneg %p128
      %p135 = scmp.eq.s32.totalorder %s18, 1
      %p136 = por %p134, %p135
      %p137 = scmp.ne.s32.totalorder %s129, %s132
      %p138 = scmp.eq.s32.totalorder %s18, 0
      %p139 = por %p137, %p138
      %p140 = scmp.ne.s32.totalorder %s129, %s132
      %p141 = scmp.eq.s32.totalorder %s23, 1
      %p142 = por %p140, %p141
      %p143 = scmp.ne.s32.totalorder %s132, %s133
      %p144 = scmp.eq.s32.totalorder %s23, 0
      %p145 = por %p143, %p144
      %p146 = scmp.ne.s32.totalorder %s132, %s133
      %p147 = scmp.eq.s32.totalorder %s24, 1
      %p148 = por %p146, %p147
      %p150 = scmp.ne.s32.totalorder %s133, %s149
      %p151 = scmp.eq.s32.totalorder %s24, 0
      %p152 = por %p150, %p151
      %s153 = ssub.s32 %s26, %s40
      %p154 = scmp.eq.s32.totalorder %s153, 0
      %s156 = sadd.s32 %s155, 1
      %s157 = scalar_select %p154, %s155, %s156
      %p160 = pneg %p154
      %p161 = scmp.eq.s32.totalorder %s18, 1
      %p162 = por %p160, %p161
      %p163 = scmp.ne.s32.totalorder %s155, %s158
      %p164 = scmp.eq.s32.totalorder %s18, 0
      %p165 = por %p163, %p164
      %p166 = scmp.ne.s32.totalorder %s155, %s158
      %p167 = scmp.eq.s32.totalorder %s23, 1
      %p168 = por %p166, %p167
      %p169 = scmp.ne.s32.totalorder %s158, %s159
      %p170 = scmp.eq.s32.totalorder %s23, 0
      %p171 = por %p169, %p170
      %p172 = scmp.ne.s32.totalorder %s158, %s159
      %p173 = scmp.eq.s32.totalorder %s24, 1
      %p174 = por %p172, %p173
      %p176 = scmp.ne.s32.totalorder %s159, %s175
      %p177 = scmp.eq.s32.totalorder %s24, 0
      %p178 = por %p176, %p177
      %s179 = ssub.s32 %s25, %s44
      %s180 = ssub.s32 %s26, %s40
      %s181 = sor.u32 %s179, %s180
      %p182 = scmp.eq.s32.totalorder %s181, 0
      %s184 = sadd.s32 %s183, 1
      %s185 = scalar_select %p182, %s183, %s184
      %p188 = pneg %p182
      %p189 = scmp.eq.s32.totalorder %s18, 1
      %p190 = por %p188, %p189
      %p191 = scmp.ne.s32.totalorder %s183, %s186
      %p192 = scmp.eq.s32.totalorder %s18, 0
      %p193 = por %p191, %p192
      %p194 = scmp.ne.s32.totalorder %s183, %s186
      %p195 = scmp.eq.s32.totalorder %s23, 1
      %p196 = por %p194, %p195
      %p197 = scmp.ne.s32.totalorder %s186, %s187
      %p198 = scmp.eq.s32.totalorder %s23, 0
      %p199 = por %p197, %p198
      %p200 = scmp.ne.s32.totalorder %s186, %s187
      %p201 = scmp.eq.s32.totalorder %s24, 1
      %p202 = por %p200, %p201
      %p204 = scmp.ne.s32.totalorder %s187, %s203
      %p205 = scmp.eq.s32.totalorder %s24, 0
      %p206 = por %p204, %p205
      %p207 = scmp.le.s32.totalorder 1, %s18
      %p208 = scmp.lt.s32.totalorder %s18, 3
      %p209 = pnand %p207, %p208
      %p210 = pneg %p209
      // Predicated region
      $region9: #{u_mlp_forward.1} parent=5 // pred_check
        _
      $region10: #{u_mlp_forward.1} parent=5 // pred_check_branch
        %212 = sbr.rel (%p209) target = $region12
      $region11: #{u_mlp_forward.1} parent=5 // pred_region
        %s213 = ssub.s32 %s18, 1
        // Predicated region
        $region13: #{u_mlp_forward.1} parent=11 // pred_check
          %p214 = pneg %p171
        $region14: #{u_mlp_forward.1} parent=11 // pred_check_branch
          %216 = sbr.rel (%p214) target = $region16
        $region15: #{u_mlp_forward.1} parent=11 // pred_region
          %s217 = smul.u32 2, %s29
          %p218 = scmp.lt.s32.totalorder %s217, 1
          %s219 = scalar_select %p218, %s217, 1
          %s220 = scalar_lea.vmem %s4, %s219
          %s221 = smul.u32 2, %s29
        $region16: #{u_mlp_forward.1} parent=11 // pred_fallthru
          _
      $region12: #{u_mlp_forward.1} parent=5 // pred_fallthru
        _
      %p222 = scmp.lt.s32.totalorder %s18, 2
      // Predicated region
      $region17: #{u_mlp_forward.1} parent=5 // pred_check
        %p223 = pneg %p222
      $region18: #{u_mlp_forward.1} parent=5 // pred_check_branch
        %225 = sbr.rel (%p223) target = $region20
      $region19: #{u_mlp_forward.1} parent=5 // pred_region
        // Predicated region
        $region21: #{u_mlp_forward.1} parent=19 // pred_check
          %p226 = pneg %p59
        $region22: #{u_mlp_forward.1} parent=19 // pred_check_branch
          %228 = sbr.rel (%p226) target = $region24
        $region23: #{u_mlp_forward.1} parent=19 // pred_region
          %s229 = sand.u32 %s49, 1
          %s230 = scalar_lea.sflag [#allocation4], %s229
          %s231 = sand.u32 %s49, 1
          %s232 = smul.addr %s231, 16
          %s233 = scalar_lea.vmem [#allocation3], %s232
          %s234 = smul.u32 2, %s25
          %s236 = ssub.s32 256, 256
          %237 = vsyncadd %s230, %s236
          %s238 = smul.addr %s234, 2
          %s239 = sadd.s32 %s27, %s238
          %s240 = smul.addr %s239, 128
          %s241 = scalar_lea.hbm %s0, %s240
          %s242 = sshll.u32 %s233, 4
          %s243 = int_to_ptr.vmem [resolvable:$true] %s242
          %248 = dma.hbm_to_vmem [thread:$0]  %s241, 256, %s243, %s230, 256, 128, 8
        $region24: #{u_mlp_forward.1} parent=19 // pred_fallthru
          _
        // Predicated region
        $region25: #{u_mlp_forward.1} parent=19 // pred_check
          %p249 = pneg %p85
        $region26: #{u_mlp_forward.1} parent=19 // pred_check_branch
          %251 = sbr.rel (%p249) target = $region28
        $region27: #{u_mlp_forward.1} parent=19 // pred_region
          %s252 = sand.u32 %s18, 1
          %s253 = scalar_lea.sflag [#allocation7], %s252
          %s254 = sand.u32 %s75, 1
          %s255 = smul.addr %s254, 256
          %s256 = scalar_lea.vmem [#allocation6], %s255
          %s258 = ssub.s32 4096, 4096
          %259 = vsyncadd %s253, %s258
          %s260 = smul.addr %s27, 32
          %s261 = smul.addr %s260, 128
          %s262 = scalar_lea.hbm %s1, %s261
          %s263 = sshll.u32 %s256, 4
          %s264 = int_to_ptr.vmem [resolvable:$true] %s263
          %269 = dma.hbm_to_vmem [thread:$0]  %s262, 4096, %s264, %s253, 256, 256, 16
        $region28: #{u_mlp_forward.1} parent=19 // pred_fallthru
          _
        // Predicated region
        $region29: #{u_mlp_forward.1} parent=19 // pred_check
          %p270 = pneg %p111
        $region30: #{u_mlp_forward.1} parent=19 // pred_check_branch
          %272 = sbr.rel (%p270) target = $region32
        $region31: #{u_mlp_forward.1} parent=19 // pred_region
          %p273 = scmp.lt.s32.totalorder %s27, 1
          %s274 = scalar_select %p273, %s27, 1
          %s275 = smul.addr %s274, 2
          %s276 = scalar_lea.vmem %s2, %s275
        $region32: #{u_mlp_forward.1} parent=19 // pred_fallthru
          _
        // Predicated region
        $region33: #{u_mlp_forward.1} parent=19 // pred_check
          %p277 = pneg %p139
        $region34: #{u_mlp_forward.1} parent=19 // pred_check_branch
          %279 = sbr.rel (%p277) target = $region36
        $region35: #{u_mlp_forward.1} parent=19 // pred_region
          %s280 = sand.u32 %s18, 1
          %s281 = scalar_lea.sflag [#allocation7], %s280
          %s282 = sand.u32 %s129, 1
          %s283 = smul.addr %s282, 512
          %s284 = scalar_lea.vmem [#allocation8], %s283
          %s285 = smul.u32 2, %s26
          %s287 = ssub.s32 8192, 8192
          %288 = vsyncadd %s281, %s287
          %s289 = smul.addr %s27, 64
          %s290 = sadd.s32 %s285, %s289
          %s291 = smul.addr %s290, 128
          %s292 = scalar_lea.hbm %s3, %s291
          %s293 = sshll.u32 %s284, 4
          %s294 = int_to_ptr.vmem [resolvable:$true] %s293
          %299 = dma.hbm_to_vmem [thread:$0]  %s292, 8192, %s294, %s281, 256, 256, 16
        $region36: #{u_mlp_forward.1} parent=19 // pred_fallthru
          _
      $region20: #{u_mlp_forward.1} parent=5 // pred_fallthru
        _
      %p300 = scmp.le.s32.totalorder 1, %s18
      %p301 = scmp.lt.s32.totalorder %s18, 3
      %p302 = pnand %p300, %p301
      %p303 = pneg %p302
      // Predicated region
      $region37: #{u_mlp_forward.1} parent=5 // pred_check
        _
      $region38: #{u_mlp_forward.1} parent=5 // pred_check_branch
        %305 = sbr.rel (%p302) target = $region40
      $region39: #{u_mlp_forward.1} parent=5 // pred_region
        %s306 = ssub.s32 %s18, 1
        %s307 = sand.u32 %s52, 1
        %s308 = scalar_lea.sflag [#allocation4], %s307
        %s309 = sand.u32 %s52, 1
        %s310 = smul.addr %s309, 16
        %s311 = scalar_lea.vmem [#allocation3], %s310
        // Predicated region
        $region41: #{u_mlp_forward.1} parent=39 // pred_check
          %p312 = pneg %p65
        $region42: #{u_mlp_forward.1} parent=39 // pred_check_branch
          %314 = sbr.rel (%p312) target = $region44
        $region43: #{u_mlp_forward.1} parent=39 // pred_region
          %315 = dma.done %s308, 256
        $region44: #{u_mlp_forward.1} parent=39 // pred_fallthru
          _
        %s316 = sand.u32 %s23, 1
        %s317 = scalar_lea.sflag [#allocation7], %s316
        %s318 = sand.u32 %s78, 1
        %s319 = smul.addr %s318, 256
        %s320 = scalar_lea.vmem [#allocation6], %s319
        // Predicated region
        $region45: #{u_mlp_forward.1} parent=39 // pred_check
          %p321 = pneg %p91
        $region46: #{u_mlp_forward.1} parent=39 // pred_check_branch
          %323 = sbr.rel (%p321) target = $region48
        $region47: #{u_mlp_forward.1} parent=39 // pred_region
          %324 = dma.done %s317, 4096
        $region48: #{u_mlp_forward.1} parent=39 // pred_fallthru
          _
        %s325 = sand.u32 %s23, 1
        %s326 = scalar_lea.sflag [#allocation7], %s325
        %s327 = sand.u32 %s132, 1
        %s328 = smul.addr %s327, 512
        %s329 = scalar_lea.vmem [#allocation8], %s328
        // Predicated region
        $region49: #{u_mlp_forward.1} parent=39 // pred_check
          %p330 = pneg %p145
        $region50: #{u_mlp_forward.1} parent=39 // pred_check_branch
          %332 = sbr.rel (%p330) target = $region52
        $region51: #{u_mlp_forward.1} parent=39 // pred_region
          %333 = dma.done %s326, 8192
        $region52: #{u_mlp_forward.1} parent=39 // pred_fallthru
          _
        %s334 = sand.u32 %s52, 1
        %s335 = scalar_lea.sflag [#allocation4], %s334
        %s336 = sand.u32 %s52, 1
        %s337 = smul.addr %s336, 16
        %s338 = scalar_lea.vmem [#allocation3], %s337
        %p339 = pneg %p65
        %p340 = pneg %p62
        %s341 = sand.u32 %s23, 1
        %s342 = scalar_lea.sflag [#allocation7], %s341
        %s343 = sand.u32 %s78, 1
        %s344 = smul.addr %s343, 256
        %s345 = scalar_lea.vmem [#allocation6], %s344
        %p346 = pneg %p91
        %p347 = pneg %p88
        %p348 = scmp.lt.s32.totalorder %s30, 1
        %s349 = scalar_select %p348, %s30, 1
        %s350 = smul.addr %s349, 2
        %s351 = scalar_lea.vmem %s2, %s350
        %p352 = pneg %p117
        %p353 = pneg %p114
        %s354 = sand.u32 %s23, 1
        %s355 = scalar_lea.sflag [#allocation7], %s354
        %s356 = sand.u32 %s132, 1
        %s357 = smul.addr %s356, 512
        %s358 = scalar_lea.vmem [#allocation8], %s357
        %p359 = pneg %p145
        %p360 = pneg %p142
        %s361 = smul.u32 2, %s29
        %p362 = scmp.lt.s32.totalorder %s361, 1
        %s363 = scalar_select %p362, %s361, 1
        %s364 = scalar_lea.vmem %s4, %s363
        %p365 = pneg %p171
        %p366 = pneg %p168
        %p367 = pneg %p199
        %p368 = pneg %p196
        %s369 = smul.u32 2, %s28
        %p370 = scmp.lt.s32.totalorder %s30, 1
        %s371 = scalar_select %p370, %s30, 1
        %s372 = smul.addr %s371, 2
        %s373 = scalar_lea.vmem %s2, %s372
        %s374 = smul.u32 2, %s29
        %s375 = smul.u32 2, %s29
        %p376 = scmp.lt.s32.totalorder %s375, 1
        %s377 = scalar_select %p376, %s375, 1
        %s378 = scalar_lea.vmem %s4, %s377
        %s379 = smul.u32 2, %s29
        %s380 = smul.u32 2, %s28
        %s381 = smul.u32 2, %s29
        %v382 = vld [vmem:[%s311] sm:$0xff]
        %v383 = vld [vmem:[%s311 + $0x8] sm:$0xff]
        %v384 = vld [vmem:[%s320] sm:$0xff]
        %v385 = vld [vmem:[%s320 + $0x8] sm:$0xff]
        %v386 = vld [vmem:[%s320 + $0x10] sm:$0xff]
        %v387 = vld [vmem:[%s320 + $0x18] sm:$0xff]
        %v388 = vld [vmem:[%s320 + $0x20] sm:$0xff]
        %v389 = vld [vmem:[%s320 + $0x28] sm:$0xff]
        %v390 = vld [vmem:[%s320 + $0x30] sm:$0xff]
        %v391 = vld [vmem:[%s320 + $0x38] sm:$0xff]
        %v392 = vld [vmem:[%s320 + $0x40] sm:$0xff]
        %v393 = vld [vmem:[%s320 + $0x48] sm:$0xff]
        %v394 = vld [vmem:[%s320 + $0x50] sm:$0xff]
        %v395 = vld [vmem:[%s320 + $0x58] sm:$0xff]
        %v396 = vld [vmem:[%s320 + $0x60] sm:$0xff]
        %v397 = vld [vmem:[%s320 + $0x68] sm:$0xff]
        %v398 = vld [vmem:[%s320 + $0x70] sm:$0xff]
        %v399 = vld [vmem:[%s320 + $0x78] sm:$0xff]
        %v400 = vld [vmem:[%s320 + $0x80] sm:$0xff]
        %v401 = vld [vmem:[%s320 + $0x88] sm:$0xff]
        %v402 = vld [vmem:[%s320 + $0x90] sm:$0xff]
        %v403 = vld [vmem:[%s320 + $0x98] sm:$0xff]
        %v404 = vld [vmem:[%s320 + $0xa0] sm:$0xff]
        %v405 = vld [vmem:[%s320 + $0xa8] sm:$0xff]
        %v406 = vld [vmem:[%s320 + $0xb0] sm:$0xff]
        %v407 = vld [vmem:[%s320 + $0xb8] sm:$0xff]
        %v408 = vld [vmem:[%s320 + $0xc0] sm:$0xff]
        %v409 = vld [vmem:[%s320 + $0xc8] sm:$0xff]
        %v410 = vld [vmem:[%s320 + $0xd0] sm:$0xff]
        %v411 = vld [vmem:[%s320 + $0xd8] sm:$0xff]
        %v412 = vld [vmem:[%s320 + $0xe0] sm:$0xff]
        %v413 = vld [vmem:[%s320 + $0xe8] sm:$0xff]
        %v414 = vld [vmem:[%s320 + $0xf0] sm:$0xff]
        %v415 = vld [vmem:[%s320 + $0xf8] sm:$0xff]
        %v416 = vld [vmem:[%s373] sm:$0x3]
        %v418 = vlaneseq
        %v419 = vshrl.u32 %v418, 7
        %v420 = vsub.s32 0, %v419
        %v421 = vrot.slane %v416, %v420
        %v422 = vlaneseq
        %v423 = vshrl.u32 %v422, 7
        %v424 = vsub.s32 1, %v423
        %v425 = vrot.slane %v416, %v424
        %428 = vmatprep.subr.mxu0 %v385
        %429 = vmatpush1.msra.mxu0 %v384
        %430 = vmatprep.subr.mxu0 %v387
        %431 = vmatpush1.msra.mxu0 %v386
        %432 = vmatprep.subr.mxu0 %v389
        %433 = vmatpush1.msra.mxu0 %v388
        %434 = vmatprep.subr.mxu0 %v391
        %435 = vmatpush1.msra.mxu0 %v390
        %436 = vmatprep.subr.mxu0 %v393
        %437 = vmatpush1.msra.mxu0 %v392
        %438 = vmatprep.subr.mxu0 %v395
        %439 = vmatpush1.msra.mxu0 %v394
        %440 = vmatprep.subr.mxu0 %v397
        %441 = vmatpush1.msra.mxu0 %v396
        %442 = vmatprep.subr.mxu0 %v399
        %443 = vmatpush1.msra.mxu0 %v398
        %444 = vmatprep.subr.mxu0 %v401
        %445 = vmatpush1.msra.mxu0 %v400
        %446 = vmatprep.subr.mxu0 %v403
        %447 = vmatpush1.msra.mxu0 %v402
        %448 = vmatprep.subr.mxu0 %v405
        %449 = vmatpush1.msra.mxu0 %v404
        %450 = vmatprep.subr.mxu0 %v407
        %451 = vmatpush1.msra.mxu0 %v406
        %452 = vmatprep.subr.mxu0 %v409
        %453 = vmatpush1.msra.mxu0 %v408
        %454 = vmatprep.subr.mxu0 %v411
        %455 = vmatpush1.msra.mxu0 %v410
        %456 = vmatprep.subr.mxu0 %v413
        %457 = vmatpush1.msra.mxu0 %v412
        %458 = vmatprep.subr.mxu0 %v415
        %459 = vmatpush1.msra.mxu0 %v414
        %460 = vmatprep.subr.mxu0 0.0
        %461 = vmatpush1.msra.mxu0 0.0
        %462 = vmatprep.subr.mxu0 0.0
        %463 = vmatpush1.msra.mxu0 0.0
        %464 = vmatprep.subr.mxu0 0.0
        %465 = vmatpush1.msra.mxu0 0.0
        %466 = vmatprep.subr.mxu0 0.0
        %467 = vmatpush1.msra.mxu0 0.0
        %468 = vmatprep.subr.mxu0 0.0
        %469 = vmatpush1.msra.mxu0 0.0
        %470 = vmatprep.subr.mxu0 0.0
        %471 = vmatpush1.msra.mxu0 0.0
        %472 = vmatprep.subr.mxu0 0.0
        %473 = vmatpush1.msra.mxu0 0.0
        %474 = vmatprep.subr.mxu0 0.0
        %475 = vmatpush1.msra.mxu0 0.0
        %476 = vmatprep.subr.mxu0 0.0
        %477 = vmatpush1.msra.mxu0 0.0
        %478 = vmatprep.subr.mxu0 0.0
        %479 = vmatpush1.msra.mxu0 0.0
        %480 = vmatprep.subr.mxu0 0.0
        %481 = vmatpush1.msra.mxu0 0.0
        %482 = vmatprep.subr.mxu0 0.0
        %483 = vmatpush1.msra.mxu0 0.0
        %484 = vmatprep.subr.mxu0 0.0
        %485 = vmatpush1.msra.mxu0 0.0
        %486 = vmatprep.subr.mxu0 0.0
        %487 = vmatpush1.msra.mxu0 0.0
        %488 = vmatprep.subr.mxu0 0.0
        %489 = vmatpush1.msra.mxu0 0.0
        %490 = vmatprep.subr.mxu0 0.0
        %491 = vmatpush1.msra.mxu0 0.0
        %492 = vmatprep.mubr.f32.mxu0 0.0
        %493 = vmatmul.mubr.f32.gmra.mrb[0].mxu0 %v382
        %v494 = vpop.f32.mrb[0].mxu0
        %v495 = vadd.f32 %v421, %v494
        %v496 = vpop.f32.mrb[0].mxu0
        %v497 = vadd.f32 %v425, %v496
        %498 = vmatprep.mubr.f32.mxu0 0.0
        %499 = vmatmul.mubr.f32.gmra.mrb[0].mxu0 %v383
        %v500 = vpop.f32.mrb[0].mxu0
        %v501 = vadd.f32 %v421, %v500
        %v502 = vpop.f32.mrb[0].mxu0
        %v503 = vadd.f32 %v425, %v502
        %504 = vdwg.mxu0
        %v505 = vmul.f32 %v495, 0.5
        %v506 = vmul.f32 %v497, 0.5
        %v507 = vmul.f32 %v501, 0.5
        %v508 = vmul.f32 %v503, 0.5
        %v509 = vmul.f32 %v495, 0.70710677
        %v510 = vmul.f32 %v497, 0.70710677
        %v511 = vmul.f32 %v501, 0.70710677
        %v512 = vmul.f32 %v503, 0.70710677
        %v513 = verf.f32.pop %v509
        %v514 = verf.f32.pop %v510
        %v515 = verf.f32.pop %v511
        %v516 = verf.f32.pop %v512
        %v517 = vadd.f32 %v513, 1.0
        %v518 = vadd.f32 %v514, 1.0
        %v519 = vadd.f32 %v515, 1.0
        %v520 = vadd.f32 %v516, 1.0
        %v521 = vmul.f32 %v505, %v517
        %v522 = vmul.f32 %v506, %v518
        %v523 = vmul.f32 %v507, %v519
        %v524 = vmul.f32 %v508, %v520
        %v525 = vld [vmem:[%s329] sm:$0xff]
        %v526 = vld [vmem:[%s329 + $0x8] sm:$0xff]
        %v527 = vld [vmem:[%s329 + $0x10] sm:$0xff]
        %v528 = vld [vmem:[%s329 + $0x18] sm:$0xff]
        %v529 = vld [vmem:[%s329 + $0x20] sm:$0xff]
        %v530 = vld [vmem:[%s329 + $0x28] sm:$0xff]
        %v531 = vld [vmem:[%s329 + $0x30] sm:$0xff]
        %v532 = vld [vmem:[%s329 + $0x38] sm:$0xff]
        %v533 = vld [vmem:[%s329 + $0x40] sm:$0xff]
        %v534 = vld [vmem:[%s329 + $0x48] sm:$0xff]
        %v535 = vld [vmem:[%s329 + $0x50] sm:$0xff]
        %v536 = vld [vmem:[%s329 + $0x58] sm:$0xff]
        %v537 = vld [vmem:[%s329 + $0x60] sm:$0xff]
        %v538 = vld [vmem:[%s329 + $0x68] sm:$0xff]
        %v539 = vld [vmem:[%s329 + $0x70] sm:$0xff]
        %v540 = vld [vmem:[%s329 + $0x78] sm:$0xff]
        %v541 = vld [vmem:[%s329 + $0x80] sm:$0xff]
        %v542 = vld [vmem:[%s329 + $0x88] sm:$0xff]
        %v543 = vld [vmem:[%s329 + $0x90] sm:$0xff]
        %v544 = vld [vmem:[%s329 + $0x98] sm:$0xff]
        %v545 = vld [vmem:[%s329 + $0xa0] sm:$0xff]
        %v546 = vld [vmem:[%s329 + $0xa8] sm:$0xff]
        %v547 = vld [vmem:[%s329 + $0xb0] sm:$0xff]
        %v548 = vld [vmem:[%s329 + $0xb8] sm:$0xff]
        %v549 = vld [vmem:[%s329 + $0xc0] sm:$0xff]
        %v550 = vld [vmem:[%s329 + $0xc8] sm:$0xff]
        %v551 = vld [vmem:[%s329 + $0xd0] sm:$0xff]
        %v552 = vld [vmem:[%s329 + $0xd8] sm:$0xff]
        %v553 = vld [vmem:[%s329 + $0xe0] sm:$0xff]
        %v554 = vld [vmem:[%s329 + $0xe8] sm:$0xff]
        %v555 = vld [vmem:[%s329 + $0xf0] sm:$0xff]
        %v556 = vld [vmem:[%s329 + $0xf8] sm:$0xff]
        %v557 = vld [vmem:[%s329 + $0x100] sm:$0xff]
        %v558 = vld [vmem:[%s329 + $0x108] sm:$0xff]
        %v559 = vld [vmem:[%s329 + $0x110] sm:$0xff]
        %v560 = vld [vmem:[%s329 + $0x118] sm:$0xff]
        %v561 = vld [vmem:[%s329 + $0x120] sm:$0xff]
        %v562 = vld [vmem:[%s329 + $0x128] sm:$0xff]
        %v563 = vld [vmem:[%s329 + $0x130] sm:$0xff]
        %v564 = vld [vmem:[%s329 + $0x138] sm:$0xff]
        %v565 = vld [vmem:[%s329 + $0x140] sm:$0xff]
        %v566 = vld [vmem:[%s329 + $0x148] sm:$0xff]
        %v567 = vld [vmem:[%s329 + $0x150] sm:$0xff]
        %v568 = vld [vmem:[%s329 + $0x158] sm:$0xff]
        %v569 = vld [vmem:[%s329 + $0x160] sm:$0xff]
        %v570 = vld [vmem:[%s329 + $0x168] sm:$0xff]
        %v571 = vld [vmem:[%s329 + $0x170] sm:$0xff]
        %v572 = vld [vmem:[%s329 + $0x178] sm:$0xff]
        %v573 = vld [vmem:[%s329 + $0x180] sm:$0xff]
        %v574 = vld [vmem:[%s329 + $0x188] sm:$0xff]
        %v575 = vld [vmem:[%s329 + $0x190] sm:$0xff]
        %v576 = vld [vmem:[%s329 + $0x198] sm:$0xff]
        %v577 = vld [vmem:[%s329 + $0x1a0] sm:$0xff]
        %v578 = vld [vmem:[%s329 + $0x1a8] sm:$0xff]
        %v579 = vld [vmem:[%s329 + $0x1b0] sm:$0xff]
        %v580 = vld [vmem:[%s329 + $0x1b8] sm:$0xff]
        %v581 = vld [vmem:[%s329 + $0x1c0] sm:$0xff]
        %v582 = vld [vmem:[%s329 + $0x1c8] sm:$0xff]
        %v583 = vld [vmem:[%s329 + $0x1d0] sm:$0xff]
        %v584 = vld [vmem:[%s329 + $0x1d8] sm:$0xff]
        %v585 = vld [vmem:[%s329 + $0x1e0] sm:$0xff]
        %v586 = vld [vmem:[%s329 + $0x1e8] sm:$0xff]
        %v587 = vld [vmem:[%s329 + $0x1f0] sm:$0xff]
        %v588 = vld [vmem:[%s329 + $0x1f8] sm:$0xff]
        %589 = vmatprep.subr.mxu0 %v526
        %590 = vmatpush1.msra.mxu0 %v525
        %591 = vmatprep.subr.mxu0 %v528
        %592 = vmatpush1.msra.mxu0 %v527
        %593 = vmatprep.subr.mxu0 %v530
        %594 = vmatpush1.msra.mxu0 %v529
        %595 = vmatprep.subr.mxu0 %v532
        %596 = vmatpush1.msra.mxu0 %v531
        %597 = vmatprep.subr.mxu0 %v534
        %598 = vmatpush1.msra.mxu0 %v533
        %599 = vmatprep.subr.mxu0 %v536
        %600 = vmatpush1.msra.mxu0 %v535
        %601 = vmatprep.subr.mxu0 %v538
        %602 = vmatpush1.msra.mxu0 %v537
        %603 = vmatprep.subr.mxu0 %v540
        %604 = vmatpush1.msra.mxu0 %v539
        %605 = vmatprep.subr.mxu0 %v542
        %606 = vmatpush1.msra.mxu0 %v541
        %607 = vmatprep.subr.mxu0 %v544
        %608 = vmatpush1.msra.mxu0 %v543
        %609 = vmatprep.subr.mxu0 %v546
        %610 = vmatpush1.msra.mxu0 %v545
        %611 = vmatprep.subr.mxu0 %v548
        %612 = vmatpush1.msra.mxu0 %v547
        %613 = vmatprep.subr.mxu0 %v550
        %614 = vmatpush1.msra.mxu0 %v549
        %615 = vmatprep.subr.mxu0 %v552
        %616 = vmatpush1.msra.mxu0 %v551
        %617 = vmatprep.subr.mxu0 %v554
        %618 = vmatpush1.msra.mxu0 %v553
        %619 = vmatprep.subr.mxu0 %v556
        %620 = vmatpush1.msra.mxu0 %v555
        %621 = vmatprep.subr.mxu0 %v558
        %622 = vmatpush1.msra.mxu0 %v557
        %623 = vmatprep.subr.mxu0 %v560
        %624 = vmatpush1.msra.mxu0 %v559
        %625 = vmatprep.subr.mxu0 %v562
        %626 = vmatpush1.msra.mxu0 %v561
        %627 = vmatprep.subr.mxu0 %v564
        %628 = vmatpush1.msra.mxu0 %v563
        %629 = vmatprep.subr.mxu0 %v566
        %630 = vmatpush1.msra.mxu0 %v565
        %631 = vmatprep.subr.mxu0 %v568
        %632 = vmatpush1.msra.mxu0 %v567
        %633 = vmatprep.subr.mxu0 %v570
        %634 = vmatpush1.msra.mxu0 %v569
        %635 = vmatprep.subr.mxu0 %v572
        %636 = vmatpush1.msra.mxu0 %v571
        %637 = vmatprep.subr.mxu0 %v574
        %638 = vmatpush1.msra.mxu0 %v573
        %639 = vmatprep.subr.mxu0 %v576
        %640 = vmatpush1.msra.mxu0 %v575
        %641 = vmatprep.subr.mxu0 %v578
        %642 = vmatpush1.msra.mxu0 %v577
        %643 = vmatprep.subr.mxu0 %v580
        %644 = vmatpush1.msra.mxu0 %v579
        %645 = vmatprep.subr.mxu0 %v582
        %646 = vmatpush1.msra.mxu0 %v581
        %647 = vmatprep.subr.mxu0 %v584
        %648 = vmatpush1.msra.mxu0 %v583
        %649 = vmatprep.subr.mxu0 %v586
        %650 = vmatpush1.msra.mxu0 %v585
        %651 = vmatprep.subr.mxu0 %v588
        %652 = vmatpush1.msra.mxu0 %v587
        %653 = vmatprep.mubr.f32.mxu0 %v522
        %654 = vmatmul.mubr.f32.gmra.mrb[0].mxu0 %v521
        %v655 = vpop.f32.mrb[0].mxu0
        %v656 = vadd.f32 0.0, %v655
        %v657 = vpop.f32.mrb[0].mxu0
        %v658 = vadd.f32 0.0, %v657
        %659 = vmatprep.mubr.f32.mxu0 %v524
        %660 = vmatmul.mubr.f32.gmra.mrb[0].mxu0 %v523
        %v661 = vpop.f32.mrb[0].mxu0
        %v662 = vadd.f32 0.0, %v661
        %v663 = vpop.f32.mrb[0].mxu0
        %v664 = vadd.f32 0.0, %v663
        %665 = vdwg.mxu0
        %p666 = scmp.eq.s32.totalorder %s30, 0
        // Predicated region
        $region53: #{u_mlp_forward.1} parent=39 // pred_check
          %p667 = pneg %p666
        $region54: #{u_mlp_forward.1} parent=39 // pred_check_branch
          %669 = sbr.rel (%p667) target = $region56
        $region55: #{u_mlp_forward.1} parent=39 // pred_region
          %670 = vst [vmem:[#allocation2] sm:$0xff] %v656
          %671 = vst [vmem:[#allocation2 + $0x8] sm:$0xff] %v658
          %672 = vst [vmem:[#allocation2 + $0x10] sm:$0xff] %v662
          %673 = vst [vmem:[#allocation2 + $0x18] sm:$0xff] %v664
        $region56: #{u_mlp_forward.1} parent=39 // pred_fallthru
          _
        %p674 = scmp.gt.s32.totalorder %s30, 0
        // Predicated region
        $region57: #{u_mlp_forward.1} parent=39 // pred_check
          %p675 = pneg %p674
        $region58: #{u_mlp_forward.1} parent=39 // pred_check_branch
          %677 = sbr.rel (%p675) target = $region60
        $region59: #{u_mlp_forward.1} parent=39 // pred_region
          %v678 = vld [vmem:[#allocation2] sm:$0xff]
          %v679 = vld [vmem:[#allocation2 + $0x8] sm:$0xff]
          %v680 = vld [vmem:[#allocation2 + $0x10] sm:$0xff]
          %v681 = vld [vmem:[#allocation2 + $0x18] sm:$0xff]
          %v682 = vadd.f32 %v678, %v656
          %v683 = vadd.f32 %v679, %v658
          %v684 = vadd.f32 %v680, %v662
          %v685 = vadd.f32 %v681, %v664
          %686 = vst [vmem:[#allocation2] sm:$0xff] %v682
          %687 = vst [vmem:[#allocation2 + $0x8] sm:$0xff] %v683
          %688 = vst [vmem:[#allocation2 + $0x10] sm:$0xff] %v684
          %689 = vst [vmem:[#allocation2 + $0x18] sm:$0xff] %v685
        $region60: #{u_mlp_forward.1} parent=39 // pred_fallthru
          _
        %p690 = scmp.eq.s32.totalorder %s30, 1
        // Predicated region
        $region61: #{u_mlp_forward.1} parent=39 // pred_check
          %p691 = pneg %p690
        $region62: #{u_mlp_forward.1} parent=39 // pred_check_branch
          %693 = sbr.rel (%p691) target = $region64
        $region63: #{u_mlp_forward.1} parent=39 // pred_region
          %v694 = vld [vmem:[#allocation2] sm:$0xff]
          %v695 = vld [vmem:[#allocation2 + $0x8] sm:$0xff]
          %v696 = vld [vmem:[#allocation2 + $0x10] sm:$0xff]
          %v697 = vld [vmem:[#allocation2 + $0x18] sm:$0xff]
          %v698 = vld [vmem:[%s378] sm:$0x3]
          %v700 = vlaneseq
          %v701 = vshrl.u32 %v700, 7
          %v702 = vsub.s32 0, %v701
          %v703 = vrot.slane %v698, %v702
          %v704 = vlaneseq
          %v705 = vshrl.u32 %v704, 7
          %v706 = vsub.s32 1, %v705
          %v707 = vrot.slane %v698, %v706
          %v710 = vadd.f32 %v694, %v703
          %v711 = vadd.f32 %v695, %v707
          %v712 = vadd.f32 %v696, %v703
          %v713 = vadd.f32 %v697, %v707
          %714 = vst [vmem:[#allocation9] sm:$0xff] %v710
          %715 = vst [vmem:[#allocation9 + $0x8] sm:$0xff] %v711
          %716 = vst [vmem:[#allocation9 + $0x10] sm:$0xff] %v712
          %717 = vst [vmem:[#allocation9 + $0x18] sm:$0xff] %v713
        $region64: #{u_mlp_forward.1} parent=39 // pred_fallthru
          _
        // Predicated region
        $region65: #{u_mlp_forward.1} parent=39 // pred_check
          %p718 = pneg %p196
        $region66: #{u_mlp_forward.1} parent=39 // pred_check_branch
          %720 = sbr.rel (%p718) target = $region68
        $region67: #{u_mlp_forward.1} parent=39 // pred_region
          %s721 = smul.u32 2, %s28
          %s722 = smul.u32 2, %s29
          %s724 = ssub.s32 512, 512
          %725 = vsyncadd [#allocation5], %s724
          %s726 = smul.addr %s721, 2
          %s727 = sadd.s32 %s722, %s726
          %s728 = smul.addr %s727, 128
          %s729 = scalar_lea.hbm %s5, %s728
          %s730 = sshll.u32 [#allocation9], 4
          %s731 = int_to_ptr.vmem [resolvable:$true] %s730
          %736 = dma.vmem_to_hbm [thread:$0]  %s731, 512, %s729, [#allocation5], 256, 256, 16
        $region68: #{u_mlp_forward.1} parent=39 // pred_fallthru
          _
        // Predicated region
        $region69: #{u_mlp_forward.1} parent=39 // pred_check
          %p737 = pneg %p196
        $region70: #{u_mlp_forward.1} parent=39 // pred_check_branch
          %739 = sbr.rel (%p737) target = $region72
        $region71: #{u_mlp_forward.1} parent=39 // pred_region
          %740 = dma.done [#allocation5], 512
        $region72: #{u_mlp_forward.1} parent=39 // pred_fallthru
          _
      $region40: #{u_mlp_forward.1} parent=5 // pred_fallthru
        _
      %p741 = scmp.le.s32.totalorder 2, %s18
      // Predicated region
      $region73: #{u_mlp_forward.1} parent=5 // pred_check
        %p742 = pneg %p741
      $region74: #{u_mlp_forward.1} parent=5 // pred_check_branch
        %744 = sbr.rel (%p742) target = $region76
      $region75: #{u_mlp_forward.1} parent=5 // pred_region
        %s745 = ssub.s32 %s18, 2
      $region76: #{u_mlp_forward.1} parent=5 // pred_fallthru
        _
    $region6: #{u_mlp_forward.1} parent=1 // loop_footer
      %s22 = sadd.s32 1, %s18
    $region7: #{u_mlp_forward.1} parent=1 // loop_footer_branch
      %17 = sbr.rel target = $region3
    $region8: #{u_mlp_forward.1} parent=1 // loop_exit
      _
    %746 = vsyncpa [#allocation4], 1
    %s747 = scalar_lea.sflag [#allocation4], 1
    %748 = vsyncpa %s747, 1
    %749 = vsyncpa [#allocation7], 1
    %s750 = scalar_lea.sflag [#allocation7], 1
    %751 = vsyncpa %s750, 1
    %752 = vsyncpa [#allocation5], 1
    %s753 = scalar_lea.sflag [#allocation5], 1
    %754 = vsyncpa %s753, 1

</llo_original>
